<compile_context>
chip_gen: v5e
topology: v5e:2x2
jax: 0.10.0
libtpu: 0.0.40
codegen_flags: <defaults>
</compile_context>

<pallas_src>
import math

import jax
import jax.numpy as jnp
from jax.experimental import pallas as pl
from jax.experimental.pallas import tpu as pltpu

_K1 = math.sqrt(2.0 / math.pi)          # sqrt(2/pi)
_K2 = _K1 * 0.044715                    # folded constant


def _round_up(n, m):
    return ((n + m - 1) // m) * m


def _gelu_tanh(h):
    # 0.5*h*(1 + tanh(k1*(h + 0.044715*h^3))) == h*(0.5 + 0.5*tanh(h*(k1 + k2*h*h)))
    inner = h * (_K1 + _K2 * (h * h))
    return h * (0.5 + 0.5 * jnp.tanh(inner))


# ---------------- kernels ----------------

def _ffn_resident_kernel(x_ref, w1_ref, b1_ref, w2_ref, b2_ref, o_ref):
    # x_ref: (TM, E_pad); w1_ref: (E_pad, H_pad); b1_ref: (1, H_pad) f32
    # w2_ref: (H_pad, E_pad); b2_ref: (1, E_pad) f32; o_ref: (TM, E_pad)
    h = jnp.dot(x_ref[...], w1_ref[...], preferred_element_type=jnp.float32) + b1_ref[...]
    g = _gelu_tanh(h)
    y = jnp.dot(g.astype(w2_ref.dtype), w2_ref[...],
                preferred_element_type=jnp.float32) + b2_ref[...]
    o_ref[...] = y.astype(o_ref.dtype)


def _ffn_stream_kernel(x_ref, w1_ref, b1_ref, w2_ref, b2_ref, o_ref, acc_ref):
    # Hidden dim streamed along grid axis 1 ("arbitrary", last). acc_ref: (TM, E_pad) f32.
    k = pl.program_id(1)

    @pl.when(k == 0)
    def _init():
        acc_ref[...] = jnp.broadcast_to(b2_ref[...].astype(jnp.float32), acc_ref.shape)

    h = jnp.dot(x_ref[...], w1_ref[...], preferred_element_type=jnp.float32) + b1_ref[...]
    g = _gelu_tanh(h)
    acc_ref[...] += jnp.dot(g.astype(w2_ref.dtype), w2_ref[...],
                            preferred_element_type=jnp.float32)

    @pl.when(k == pl.num_programs(1) - 1)
    def _fin():
        o_ref[...] = acc_ref[...].astype(o_ref.dtype)


# ---------------- wrapper ----------------

def _vmem_budget_bytes():
    try:
        cap = pltpu.get_tpu_info().vmem_capacity_bytes
    except Exception:
        cap = 64 << 20  # conservative fallback (v7x per-TC VMEM)
    return int(cap * 0.80)  # headroom for compiler-internal scratch


def prepare_ffn_params(w1, b1, w2, b2, *, compute_dtype=None):
    """Pad/cast parameters ONCE (not per call). w1:(E,H) b1:(H,)|(1,H) w2:(H,E) b2:(E,)|(1,E)."""
    E, H = w1.shape
    E_pad = _round_up(E, 128)
    H_pad = _round_up(H, 128)
    wdt = jnp.dtype(compute_dtype) if compute_dtype is not None else w1.dtype
    w1_p = jnp.pad(w1, ((0, E_pad - E), (0, H_pad - H))).astype(wdt)
    w2_p = jnp.pad(w2, ((0, H_pad - H), (0, E_pad - E))).astype(wdt)
    # Biases stay f32: added to the f32 MXU accumulators, essentially free.
    b1_p = jnp.pad(jnp.reshape(b1, (1, -1)), ((0, 0), (0, H_pad - H))).astype(jnp.float32)
    b2_p = jnp.pad(jnp.reshape(b2, (1, -1)), ((0, 0), (0, E_pad - E))).astype(jnp.float32)
    return dict(w1=w1_p, b1=b1_p, w2=w2_p, b2=b2_p, E=E, H=H, E_pad=E_pad, H_pad=H_pad)


def feedforward(x, params, *, tm_target=512, th_target=512):
    """x: (B, S, E) -> (B, S, E), using pre-padded params from prepare_ffn_params."""
    B, S, E = x.shape
    assert E == params["E"], "emb_dim mismatch between x and params"
    H, E_pad, H_pad = params["H"], params["E_pad"], params["H_pad"]
    w1_p, b1_p, w2_p, b2_p = params["w1"], params["b1"], params["w2"], params["b2"]

    cdt = w1_p.dtype
    dbytes = jnp.dtype(cdt).itemsize
    obytes = jnp.dtype(x.dtype).itemsize
    sublane = max(8, 32 // dbytes)          # 8 for f32, 16 for bf16 (packed sublanes)

    M = B * S

    def _choose_tm(tmt):
        n = max(1, -(-M // tmt))
        if n < 2 and M >= 2 * sublane:
            n = 2                            # let both v7x TensorCores work
        tm = _round_up(-(-M // n), sublane)  # minimal row padding
        return tm, n * tm

    TM, M_pad = _choose_tm(tm_target)
    budget = _vmem_budget_bytes()

    # Footprint with weights fully VMEM-resident (grid-invariant blocks -> fetched once).
    def _resident_bytes(tm):
        return (2 * E_pad * H_pad * dbytes           # W1 + W2
                + (H_pad + E_pad) * 4                # biases (f32)
                + 2 * tm * E_pad * dbytes            # x tiles (double-buffered)
                + 2 * tm * E_pad * obytes            # out tiles (double-buffered)
                + tm * H_pad * 4 + tm * E_pad * 4)   # f32 h/gelu/y live values

    use_resident = _resident_bytes(TM) <= budget
    if not use_resident and dbytes <= 2:
        # Weights must stream: taller M tile raises arithmetic intensity (~TM flop/byte).
        TM, M_pad = _choose_tm(max(tm_target, 1024))

    x_p = jnp.pad(x.reshape(M, E), ((0, M_pad - M), (0, E_pad - E))).astype(cdt)

    cost = pl.CostEstimate(
        flops=4 * M * E * H,                 # two matmuls, 2*M*E*H each
        transcendentals=M * H,               # one tanh per hidden activation
        bytes_accessed=(2 * M * E + 2 * E * H + E + H) * dbytes,
    )

    if use_resident:
        vmem_limit = int(min(max(2 * _resident_bytes(TM), 16 << 20), budget))
        out_p = pl.pallas_call(
            _ffn_resident_kernel,
            out_shape=jax.ShapeDtypeStruct((M_pad, E_pad), x.dtype),
            grid_spec=pltpu.PrefetchScalarGridSpec(
                num_scalar_prefetch=0,
                grid=(M_pad // TM,),
                in_specs=[
                    pl.BlockSpec((TM, E_pad), lambda i: (i, 0)),      # x tile
                    pl.BlockSpec((E_pad, H_pad), lambda i: (0, 0)),   # W1 resident
                    pl.BlockSpec((1, H_pad), lambda i: (0, 0)),       # b1 resident
                    pl.BlockSpec((H_pad, E_pad), lambda i: (0, 0)),   # W2 resident
                    pl.BlockSpec((1, E_pad), lambda i: (0, 0)),       # b2 resident
                ],
                out_specs=pl.BlockSpec((TM, E_pad), lambda i: (i, 0)),
            ),
            compiler_params=pltpu.CompilerParams(
                dimension_semantics=("parallel",),
                vmem_limit_bytes=vmem_limit,
            ),
            cost_estimate=cost,
        )(x_p, w1_p, b1_p, w2_p, b2_p)
    else:
        # Streaming fallback: hidden dim tiled along the (last, "arbitrary") grid axis.
        th_blocks = max(1, min(th_target, H_pad) // 128)
        n_h_blocks = H_pad // 128
        while n_h_blocks % th_blocks:
            th_blocks -= 1
        TH = th_blocks * 128

        stream_bytes = (2 * TM * E_pad * dbytes            # x tiles
                        + 2 * E_pad * TH * dbytes           # W1 slabs
                        + 2 * TH * E_pad * dbytes           # W2 slabs
                        + 2 * (TH + E_pad) * 4              # bias slabs
                        + 2 * TM * E_pad * obytes           # out tiles
                        + TM * E_pad * 4                    # f32 accumulator
                        + 2 * TM * TH * 4)                  # h / gelu live values
        vmem_limit = int(min(max(2 * stream_bytes, 32 << 20), budget))
        # TODO(synk): add pipeline_mode=pl.Buffered(3) on W1/W2 slabs if profiles show
        # exposed per-k weight DMA (skip on v7x when VMEM is tight).
        out_p = pl.pallas_call(
            _ffn_stream_kernel,
            out_shape=jax.ShapeDtypeStruct((M_pad, E_pad), x.dtype),
            grid_spec=pltpu.PrefetchScalarGridSpec(
                num_scalar_prefetch=0,
                grid=(M_pad // TM, H_pad // TH),
                in_specs=[
                    pl.BlockSpec((TM, E_pad), lambda i, k: (i, 0)),   # x tile
                    pl.BlockSpec((E_pad, TH), lambda i, k: (0, k)),   # W1 H-slab
                    pl.BlockSpec((1, TH), lambda i, k: (0, k)),       # b1 H-slab
                    pl.BlockSpec((TH, E_pad), lambda i, k: (k, 0)),   # W2 H-slab
                    pl.BlockSpec((1, E_pad), lambda i, k: (0, 0)),    # b2 resident
                ],
                out_specs=pl.BlockSpec((TM, E_pad), lambda i, k: (i, 0)),
                scratch_shapes=[pltpu.VMEM((TM, E_pad), jnp.float32)],
            ),
            compiler_params=pltpu.CompilerParams(
                dimension_semantics=("parallel", "arbitrary"),
                vmem_limit_bytes=vmem_limit,
            ),
            cost_estimate=cost,
        )(x_p, w1_p, b1_p, w2_p, b2_p)

    return out_p[:M, :E].reshape(B, S, E)


def _reference(x2d, w1, b1, w2, b2):
    h = x2d @ w1 + b1
    g = 0.5 * h * (1.0 + jnp.tanh(_K1 * (h + 0.044715 * h ** 3)))
    return g @ w2 + b2


if __name__ == "__main__":
    # cfg['emb_dim'] = 32  ->  hidden = 4 * 32 = 128
    B, S, E = 2, 8, 32
    H = 4 * E

    key = jax.random.PRNGKey(0)
    kx, k1, kb1, k2, kb2 = jax.random.split(key, 5)

    x = jax.random.normal(kx, (B, S, E), dtype=jnp.float32)
    # Deterministic synthetic Linear(E,H) / Linear(H,E) params, stored [in, out].
    w1 = jax.random.normal(k1, (E, H), dtype=jnp.float32) * 0.02
    b1 = jax.random.normal(kb1, (1, H), dtype=jnp.float32) * 0.02
    w2 = jax.random.normal(k2, (H, E), dtype=jnp.float32) * 0.02
    b2 = jax.random.normal(kb2, (1, E), dtype=jnp.float32) * 0.02

    ref = _reference(x.reshape(B * S, E), w1, b1, w2, b2).reshape(B, S, E)

    # Default f32 path: matches the PyTorch reference tightly.
    params = prepare_ffn_params(w1, b1, w2, b2)
    out = jax.block_until_ready(feedforward(x, params))
    assert out.shape == (B, S, E)
    assert jnp.allclose(out, ref, atol=1e-5, rtol=1e-5)

    # Optional bf16-MXU path (f32 accumulation): relaxed tolerance, perf mode.
    params_bf16 = prepare_ffn_params(w1, b1, w2, b2, compute_dtype=jnp.bfloat16)
    out_bf16 = jax.block_until_ready(feedforward(x, params_bf16))
    assert jnp.allclose(out_bf16.astype(jnp.float32), ref, atol=3e-2, rtol=3e-2)

    print("KERNEL_OK")
</pallas_src>

<mosaic_0001>
module attributes {stable_mosaic.version = 11 : i64} {
  func.func @_ffn_resident_kernel(%arg0: i32, %arg1: memref<8x128xf32, #tpu.memory_space<vmem>>, %arg2: memref<128x128xf32, #tpu.memory_space<vmem>>, %arg3: memref<1x128xf32, #tpu.memory_space<vmem>>, %arg4: memref<128x128xf32, #tpu.memory_space<vmem>>, %arg5: memref<1x128xf32, #tpu.memory_space<vmem>>, %arg6: memref<8x128xf32, #tpu.memory_space<vmem>>) attributes {dimension_semantics = [#tpu.dimension_semantics<parallel>], iteration_bounds = array<i64: 2>, scalar_prefetch = 0 : i64, scratch_operands = 0 : i64, tpu.core_type = #tpu.core_type<tc>, window_params = [{transform_indices = @transform_0, window_bounds = array<i64: 8, 128>}, {pipeline_mode = #tpu.pipeline_mode<synchronous>, transform_indices = @transform_1, window_bounds = array<i64: 128, 128>}, {pipeline_mode = #tpu.pipeline_mode<synchronous>, transform_indices = @transform_2, window_bounds = array<i64: 1, 128>}, {pipeline_mode = #tpu.pipeline_mode<synchronous>, transform_indices = @transform_3, window_bounds = array<i64: 128, 128>}, {pipeline_mode = #tpu.pipeline_mode<synchronous>, transform_indices = @transform_4, window_bounds = array<i64: 1, 128>}, {transform_indices = @transform_5, window_bounds = array<i64: 8, 128>}]} {
    %c0 = arith.constant 0 : index
    %c0_0 = arith.constant 0 : index
    %0 = vector.load %arg1[%c0, %c0_0] : memref<8x128xf32, #tpu.memory_space<vmem>>, vector<8x128xf32>
    %c0_1 = arith.constant 0 : index
    %c0_2 = arith.constant 0 : index
    %1 = vector.load %arg2[%c0_1, %c0_2] : memref<128x128xf32, #tpu.memory_space<vmem>>, vector<128x128xf32>
    %cst = arith.constant dense<0.000000e+00> : vector<8x128xf32>
    %2 = tpu.matmul %0, %1, %cst {dimension_numbers = #tpu.dot_dimension_numbers<[1], [0], [0], [1], [0, 0, 1, 1], [], []>} : vector<8x128xf32>, vector<128x128xf32>, vector<8x128xf32> -> vector<8x128xf32>
    %c0_3 = arith.constant 0 : index
    %c0_4 = arith.constant 0 : index
    %3 = vector.load %arg3[%c0_3, %c0_4] : memref<1x128xf32, #tpu.memory_space<vmem>>, vector<1x128xf32>
    %4 = vector.broadcast %3 : vector<1x128xf32> to vector<8x128xf32>
    %5 = arith.addf %2, %4 : vector<8x128xf32>
    %6 = arith.mulf %5, %5 : vector<8x128xf32>
    %cst_5 = arith.constant 0.0356774069 : f32
    %7 = vector.broadcast %cst_5 : f32 to vector<8x128xf32>
    %8 = arith.mulf %7, %6 : vector<8x128xf32>
    %cst_6 = arith.constant 0.797884583 : f32
    %9 = vector.broadcast %cst_6 : f32 to vector<8x128xf32>
    %10 = arith.addf %9, %8 : vector<8x128xf32>
    %11 = arith.mulf %5, %10 : vector<8x128xf32>
    %12 = math.tanh %11 : vector<8x128xf32>
    %cst_7 = arith.constant 5.000000e-01 : f32
    %13 = vector.broadcast %cst_7 : f32 to vector<8x128xf32>
    %14 = arith.mulf %13, %12 : vector<8x128xf32>
    %cst_8 = arith.constant 5.000000e-01 : f32
    %15 = vector.broadcast %cst_8 : f32 to vector<8x128xf32>
    %16 = arith.addf %15, %14 : vector<8x128xf32>
    %17 = arith.mulf %5, %16 : vector<8x128xf32>
    %c0_9 = arith.constant 0 : index
    %c0_10 = arith.constant 0 : index
    %18 = vector.load %arg4[%c0_9, %c0_10] : memref<128x128xf32, #tpu.memory_space<vmem>>, vector<128x128xf32>
    %cst_11 = arith.constant dense<0.000000e+00> : vector<8x128xf32>
    %19 = tpu.matmul %17, %18, %cst_11 {dimension_numbers = #tpu.dot_dimension_numbers<[1], [0], [0], [1], [0, 0, 1, 1], [], []>} : vector<8x128xf32>, vector<128x128xf32>, vector<8x128xf32> -> vector<8x128xf32>
    %c0_12 = arith.constant 0 : index
    %c0_13 = arith.constant 0 : index
    %20 = vector.load %arg5[%c0_12, %c0_13] : memref<1x128xf32, #tpu.memory_space<vmem>>, vector<1x128xf32>
    %21 = vector.broadcast %20 : vector<1x128xf32> to vector<8x128xf32>
    %22 = arith.addf %19, %21 : vector<8x128xf32>
    %c0_14 = arith.constant 0 : index
    %c0_15 = arith.constant 0 : index
    %23 = vector.load %arg6[%c0_14, %c0_15] : memref<8x128xf32, #tpu.memory_space<vmem>>, vector<8x128xf32>
    tpu.vector_store %arg6[%c0_14, %c0_15], %22 {strides = array<i32>} : memref<8x128xf32, #tpu.memory_space<vmem>>, vector<8x128xf32>,
    return
  }
  func.func @transform_0(%arg0: i32) -> (i32, i32) {
    %c0_i32 = arith.constant 0 : i32
    %c0_i32_0 = arith.constant 0 : i32
    return %arg0, %c0_i32 : i32, i32
  }
  func.func @transform_1(%arg0: i32) -> (i32, i32) {
    %c0_i32 = arith.constant 0 : i32
    %c0_i32_0 = arith.constant 0 : i32
    %c0_i32_1 = arith.constant 0 : i32
    return %c0_i32, %c0_i32_0 : i32, i32
  }
  func.func @transform_2(%arg0: i32) -> (i32, i32) {
    %c0_i32 = arith.constant 0 : i32
    %c0_i32_0 = arith.constant 0 : i32
    %c0_i32_1 = arith.constant 0 : i32
    return %c0_i32, %c0_i32_0 : i32, i32
  }
  func.func @transform_3(%arg0: i32) -> (i32, i32) {
    %c0_i32 = arith.constant 0 : i32
    %c0_i32_0 = arith.constant 0 : i32
    %c0_i32_1 = arith.constant 0 : i32
    return %c0_i32, %c0_i32_0 : i32, i32
  }
  func.func @transform_4(%arg0: i32) -> (i32, i32) {
    %c0_i32 = arith.constant 0 : i32
    %c0_i32_0 = arith.constant 0 : i32
    %c0_i32_1 = arith.constant 0 : i32
    return %c0_i32, %c0_i32_0 : i32, i32
  }
  func.func @transform_5(%arg0: i32) -> (i32, i32) {
    %c0_i32 = arith.constant 0 : i32
    %c0_i32_0 = arith.constant 0 : i32
    return %arg0, %c0_i32 : i32, i32
  }
}

</mosaic_0001>

<llo_original>
// kernel: tpu_custom_call.1
$region0: #{tpu_custom_call.1}
  #allocation0 [shape = 'u32[]', space=smem, size = 0x4, offset = 0x4, fixed_abs, tag = 'smem constant byte address 0x4 - core index']
  #allocation1 [shape = 'u32[72,128]{1,0:T(1,128)}', space=vmem, size = 0x9000, scoped, tag = 'internal scratch']
  %s0 = inlined_call_operand.hbm [shape: f32[16,128], index: 0, kind: input, shape index: {}]
  %s1 = inlined_call_operand.hbm [shape: f32[128,128], index: 1, kind: input, shape index: {}]
  %s2 = inlined_call_operand.vmem [shape: f32[1,128], index: 2, kind: input, shape index: {}]
  %s3 = inlined_call_operand.hbm [shape: f32[128,128], index: 3, kind: input, shape index: {}]
  %s4 = inlined_call_operand.vmem [shape: f32[1,128], index: 4, kind: input, shape index: {}]
  %s5 = inlined_call_operand.hbm [shape: f32[16,128], index: 5, kind: output, shape index: {}]
  %s6 = sld [smem:[#allocation0]]
  $region65: #{tpu_custom_call.1} parent=0
    _
  %s8 = ssub.s32 1, %s6
  %s9 = scalar_select 0, %s8, %s6
  $region1: #{tpu_custom_call.1} parent=0
    #allocation2 [shape = 'u8[8192]{0}', space=vmem, size = 0x2000, scoped, tag = 'input window, operand 0']
    #allocation3 [shape = 's32[2]{0}', space=sflag, size = 0x8, scoped, tag = 'scoped memory for tpu_custom_call.1']
    #allocation4 [shape = 's32[2]{0}', space=sflag, size = 0x8, scoped, tag = 'scoped memory for tpu_custom_call.1']
    #allocation5 [shape = 'u8[65536]{0}', space=vmem, size = 0x10000, scoped, tag = 'input window, operand 1, single buffered']
    #allocation6 [shape = 's32[1]{0}', space=sflag, size = 0x4, scoped, tag = 'scoped memory for tpu_custom_call.1']
    #allocation7 [shape = 'u8[65536]{0}', space=vmem, size = 0x10000, scoped, tag = 'input window, operand 3, single buffered']
    #allocation8 [shape = 'u8[8192]{0}', space=vmem, size = 0x2000, scoped, tag = 'output window, operand 0']
    %10 = vsyncpa [#allocation3], 0
    %s11 = scalar_lea.sflag [#allocation3], 1
    %12 = vsyncpa %s11, 0
    %13 = vsyncpa [#allocation6], 0
    %14 = vsyncpa [#allocation4], 0
    %s15 = scalar_lea.sflag [#allocation4], 1
    %16 = vsyncpa %s15, 0
    loop: start=0, step=1, limit=4
    $region2: #{tpu_custom_call.1} parent=1 // loop_pre_header
      _
    $region3: #{tpu_custom_call.1} parent=1 // loop_header
      %s18 = sphi 0, %s22
      %p19 = scmp.ge.s32.totalorder %s18, 4
      %s28 = sphi 0, %s30
      %s31 = sphi 0, %s28
      %s32 = sphi 0, %s31
      %s48 = sphi 0, %s32
      %s52 = sphi 0, %s52
      %s54 = sphi 0, %s52
      %s55 = sphi 0, %s54
      %s69 = sphi 0, %s55
      %s73 = sphi 0, %s73
      %s75 = sphi 0, %s73
      %s76 = sphi 0, %s75
      %s90 = sphi 0, %s76
      %s94 = sphi 0, %s94
      %s96 = sphi 0, %s94
      %s97 = sphi 0, %s96
      %s111 = sphi 0, %s97
      %s115 = sphi 0, %s115
      %s117 = sphi 0, %s115
      %s118 = sphi 0, %s117
      %s132 = sphi 0, %s118
      %s138 = sphi 0, %s140
      %s141 = sphi 0, %s138
      %s142 = sphi 0, %s141
      %s158 = sphi 0, %s142
    $region4: #{tpu_custom_call.1} parent=1 // loop_header_branch
      %21 = sbr.rel (%p19) target = $region8
    $region5: #{tpu_custom_call.1} parent=1 // loop_body
      %s23 = ssub.s32 %s18, 1
      %s24 = ssub.s32 %s18, 2
      %s25 = sadd.s32 %s18, 1
      %s26 = ssub.s32 %s18, %s25
      %p27 = scmp.eq.s32.totalorder %s26, 0
      %s29 = sadd.s32 %s28, 1
      %s30 = scalar_select %p27, %s28, %s29
      %p33 = pneg %p27
      %p34 = scmp.eq.s32.totalorder %s18, 1
      %p35 = por %p33, %p34
      %p36 = scmp.ne.s32.totalorder %s28, %s31
      %p37 = scmp.eq.s32.totalorder %s18, 0
      %p38 = por %p36, %p37
      %p39 = scmp.ne.s32.totalorder %s28, %s31
      %p40 = scmp.eq.s32.totalorder %s23, 1
      %p41 = por %p39, %p40
      %p42 = scmp.ne.s32.totalorder %s31, %s32
      %p43 = scmp.eq.s32.totalorder %s23, 0
      %p44 = por %p42, %p43
      %p45 = scmp.ne.s32.totalorder %s31, %s32
      %p46 = scmp.eq.s32.totalorder %s24, 1
      %p47 = por %p45, %p46
      %p49 = scmp.ne.s32.totalorder %s32, %s48
      %p50 = scmp.eq.s32.totalorder %s24, 0
      %p51 = por %p49, %p50
      %s53 = sadd.s32 %s52, 1
      %p56 = scmp.eq.s32.totalorder %s18, 1
      %p57 = scmp.ne.s32.totalorder %s52, %s54
      %p58 = scmp.eq.s32.totalorder %s18, 0
      %p59 = por %p57, %p58
      %p60 = scmp.ne.s32.totalorder %s52, %s54
      %p61 = scmp.eq.s32.totalorder %s23, 1
      %p62 = por %p60, %p61
      %p63 = scmp.ne.s32.totalorder %s54, %s55
      %p64 = scmp.eq.s32.totalorder %s23, 0
      %p65 = por %p63, %p64
      %p66 = scmp.ne.s32.totalorder %s54, %s55
      %p67 = scmp.eq.s32.totalorder %s24, 1
      %p68 = por %p66, %p67
      %p70 = scmp.ne.s32.totalorder %s55, %s69
      %p71 = scmp.eq.s32.totalorder %s24, 0
      %p72 = por %p70, %p71
      %s74 = sadd.s32 %s73, 1
      %p77 = scmp.eq.s32.totalorder %s18, 1
      %p78 = scmp.ne.s32.totalorder %s73, %s75
      %p79 = scmp.eq.s32.totalorder %s18, 0
      %p80 = por %p78, %p79
      %p81 = scmp.ne.s32.totalorder %s73, %s75
      %p82 = scmp.eq.s32.totalorder %s23, 1
      %p83 = por %p81, %p82
      %p84 = scmp.ne.s32.totalorder %s75, %s76
      %p85 = scmp.eq.s32.totalorder %s23, 0
      %p86 = por %p84, %p85
      %p87 = scmp.ne.s32.totalorder %s75, %s76
      %p88 = scmp.eq.s32.totalorder %s24, 1
      %p89 = por %p87, %p88
      %p91 = scmp.ne.s32.totalorder %s76, %s90
      %p92 = scmp.eq.s32.totalorder %s24, 0
      %p93 = por %p91, %p92
      %s95 = sadd.s32 %s94, 1
      %p98 = scmp.eq.s32.totalorder %s18, 1
      %p99 = scmp.ne.s32.totalorder %s94, %s96
      %p100 = scmp.eq.s32.totalorder %s18, 0
      %p101 = por %p99, %p100
      %p102 = scmp.ne.s32.totalorder %s94, %s96
      %p103 = scmp.eq.s32.totalorder %s23, 1
      %p104 = por %p102, %p103
      %p105 = scmp.ne.s32.totalorder %s96, %s97
      %p106 = scmp.eq.s32.totalorder %s23, 0
      %p107 = por %p105, %p106
      %p108 = scmp.ne.s32.totalorder %s96, %s97
      %p109 = scmp.eq.s32.totalorder %s24, 1
      %p110 = por %p108, %p109
      %p112 = scmp.ne.s32.totalorder %s97, %s111
      %p113 = scmp.eq.s32.totalorder %s24, 0
      %p114 = por %p112, %p113
      %s116 = sadd.s32 %s115, 1
      %p119 = scmp.eq.s32.totalorder %s18, 1
      %p120 = scmp.ne.s32.totalorder %s115, %s117
      %p121 = scmp.eq.s32.totalorder %s18, 0
      %p122 = por %p120, %p121
      %p123 = scmp.ne.s32.totalorder %s115, %s117
      %p124 = scmp.eq.s32.totalorder %s23, 1
      %p125 = por %p123, %p124
      %p126 = scmp.ne.s32.totalorder %s117, %s118
      %p127 = scmp.eq.s32.totalorder %s23, 0
      %p128 = por %p126, %p127
      %p129 = scmp.ne.s32.totalorder %s117, %s118
      %p130 = scmp.eq.s32.totalorder %s24, 1
      %p131 = por %p129, %p130
      %p133 = scmp.ne.s32.totalorder %s118, %s132
      %p134 = scmp.eq.s32.totalorder %s24, 0
      %p135 = por %p133, %p134
      %s136 = ssub.s32 %s18, %s25
      %p137 = scmp.eq.s32.totalorder %s136, 0
      %s139 = sadd.s32 %s138, 1
      %s140 = scalar_select %p137, %s138, %s139
      %p143 = pneg %p137
      %p144 = scmp.eq.s32.totalorder %s18, 1
      %p145 = por %p143, %p144
      %p146 = scmp.ne.s32.totalorder %s138, %s141
      %p147 = scmp.eq.s32.totalorder %s18, 0
      %p148 = por %p146, %p147
      %p149 = scmp.ne.s32.totalorder %s138, %s141
      %p150 = scmp.eq.s32.totalorder %s23, 1
      %p151 = por %p149, %p150
      %p152 = scmp.ne.s32.totalorder %s141, %s142
      %p153 = scmp.eq.s32.totalorder %s23, 0
      %p154 = por %p152, %p153
      %p155 = scmp.ne.s32.totalorder %s141, %s142
      %p156 = scmp.eq.s32.totalorder %s24, 1
      %p157 = por %p155, %p156
      %p159 = scmp.ne.s32.totalorder %s142, %s158
      %p160 = scmp.eq.s32.totalorder %s24, 0
      %p161 = por %p159, %p160
      %p162 = scmp.le.s32.totalorder 1, %s18
      %p163 = scmp.lt.s32.totalorder %s18, 3
      %p164 = pnand %p162, %p163
      %p165 = pneg %p164
      // Predicated region
      $region9: #{tpu_custom_call.1} parent=5 // pred_check
        _
      $region10: #{tpu_custom_call.1} parent=5 // pred_check_branch
        %167 = sbr.rel (%p164) target = $region12
      $region11: #{tpu_custom_call.1} parent=5 // pred_region
        %s168 = ssub.s32 %s18, 1
        // Predicated region
        $region13: #{tpu_custom_call.1} parent=11 // pred_check
          %p169 = pneg %p65
        $region14: #{tpu_custom_call.1} parent=11 // pred_check_branch
          %171 = sbr.rel (%p169) target = $region16
        $region15: #{tpu_custom_call.1} parent=11 // pred_region
          %173 = vsyncadd [#allocation6], 0
          %s174 = sshll.u32 %s1, 4
          %s175 = int_to_ptr.hbm [resolvable:$true] %s174
          %s176 = sshll.u32 [#allocation5], 4
          %s177 = int_to_ptr.vmem [resolvable:$true] %s176
          %182 = dma.hbm_to_vmem [thread:$0]  %s175, 2048, %s177, [#allocation6], 128, 128, 8
        $region16: #{tpu_custom_call.1} parent=11 // pred_fallthru
          _
        // Predicated region
        $region17: #{tpu_custom_call.1} parent=11 // pred_check
          %p183 = pneg %p86
        $region18: #{tpu_custom_call.1} parent=11 // pred_check_branch
          %185 = sbr.rel (%p183) target = $region20
        $region19: #{tpu_custom_call.1} parent=11 // pred_region
          _
        $region20: #{tpu_custom_call.1} parent=11 // pred_fallthru
          _
        // Predicated region
        $region21: #{tpu_custom_call.1} parent=11 // pred_check
          %p186 = pneg %p107
        $region22: #{tpu_custom_call.1} parent=11 // pred_check_branch
          %188 = sbr.rel (%p186) target = $region24
        $region23: #{tpu_custom_call.1} parent=11 // pred_region
          %190 = vsyncadd [#allocation6], 0
          %s191 = sshll.u32 %s3, 4
          %s192 = int_to_ptr.hbm [resolvable:$true] %s191
          %s193 = sshll.u32 [#allocation7], 4
          %s194 = int_to_ptr.vmem [resolvable:$true] %s193
          %199 = dma.hbm_to_vmem [thread:$0]  %s192, 2048, %s194, [#allocation6], 128, 128, 8
        $region24: #{tpu_custom_call.1} parent=11 // pred_fallthru
          _
        // Predicated region
        $region25: #{tpu_custom_call.1} parent=11 // pred_check
          %p200 = pneg %p128
        $region26: #{tpu_custom_call.1} parent=11 // pred_check_branch
          %202 = sbr.rel (%p200) target = $region28
        $region27: #{tpu_custom_call.1} parent=11 // pred_region
          _
        $region28: #{tpu_custom_call.1} parent=11 // pred_fallthru
          _
      $region12: #{tpu_custom_call.1} parent=5 // pred_fallthru
        _
      %p203 = scmp.lt.s32.totalorder %s18, 2
      // Predicated region
      $region29: #{tpu_custom_call.1} parent=5 // pred_check
        %p204 = pneg %p203
      $region30: #{tpu_custom_call.1} parent=5 // pred_check_branch
        %206 = sbr.rel (%p204) target = $region32
      $region31: #{tpu_custom_call.1} parent=5 // pred_region
        // Predicated region
        $region33: #{tpu_custom_call.1} parent=31 // pred_check
          %p207 = pneg %p38
        $region34: #{tpu_custom_call.1} parent=31 // pred_check_branch
          %209 = sbr.rel (%p207) target = $region36
        $region35: #{tpu_custom_call.1} parent=31 // pred_region
          %s210 = sand.u32 %s28, 1
          %s211 = scalar_lea.sflag [#allocation3], %s210
          %s212 = sand.u32 %s28, 1
          %s213 = smul.addr %s212, 8
          %s214 = scalar_lea.vmem [#allocation2], %s213
          %216 = vsyncadd %s211, 0
          %s217 = smul.addr %s18, 8
          %s218 = scalar_lea.hbm %s0, %s217
          %s220 = sshll.u32 %s218, 4
          %s221 = int_to_ptr.hbm [resolvable:$true] %s220
          %s222 = sshll.u32 %s214, 4
          %s223 = int_to_ptr.vmem [resolvable:$true] %s222
          %225 = dma.hbm_to_vmem [thread:$0]  %s221, 128, %s223, %s211
        $region36: #{tpu_custom_call.1} parent=31 // pred_fallthru
          _
      $region32: #{tpu_custom_call.1} parent=5 // pred_fallthru
        _
      %p226 = scmp.le.s32.totalorder 1, %s18
      %p227 = scmp.lt.s32.totalorder %s18, 3
      %p228 = pnand %p226, %p227
      %p229 = pneg %p228
      // Predicated region
      $region37: #{tpu_custom_call.1} parent=5 // pred_check
        _
      $region38: #{tpu_custom_call.1} parent=5 // pred_check_branch
        %231 = sbr.rel (%p228) target = $region40
      $region39: #{tpu_custom_call.1} parent=5 // pred_region
        %s232 = ssub.s32 %s18, 1
        %s233 = sand.u32 %s31, 1
        %s234 = scalar_lea.sflag [#allocation3], %s233
        %s235 = sand.u32 %s31, 1
        %s236 = smul.addr %s235, 8
        %s237 = scalar_lea.vmem [#allocation2], %s236
        // Predicated region
        $region41: #{tpu_custom_call.1} parent=39 // pred_check
          %p238 = pneg %p44
        $region42: #{tpu_custom_call.1} parent=39 // pred_check_branch
          %240 = sbr.rel (%p238) target = $region44
        $region43: #{tpu_custom_call.1} parent=39 // pred_region
          %242 = dma.done %s234, 128
        $region44: #{tpu_custom_call.1} parent=39 // pred_fallthru
          _
        // Predicated region
        $region45: #{tpu_custom_call.1} parent=39 // pred_check
          %p243 = pneg %p65
        $region46: #{tpu_custom_call.1} parent=39 // pred_check_branch
          %245 = sbr.rel (%p243) target = $region48
        $region47: #{tpu_custom_call.1} parent=39 // pred_region
          %247 = dma.done [#allocation6], 2048
        $region48: #{tpu_custom_call.1} parent=39 // pred_fallthru
          _
        // Predicated region
        $region49: #{tpu_custom_call.1} parent=39 // pred_check
          %p248 = pneg %p107
        $region50: #{tpu_custom_call.1} parent=39 // pred_check_branch
          %250 = sbr.rel (%p248) target = $region52
        $region51: #{tpu_custom_call.1} parent=39 // pred_region
          %252 = dma.done [#allocation6], 2048
        $region52: #{tpu_custom_call.1} parent=39 // pred_fallthru
          _
        %s253 = sand.u32 %s31, 1
        %s254 = scalar_lea.sflag [#allocation3], %s253
        %s255 = sand.u32 %s31, 1
        %s256 = smul.addr %s255, 8
        %s257 = scalar_lea.vmem [#allocation2], %s256
        %p258 = pneg %p44
        %p259 = pneg %p41
        %p260 = pneg %p65
        %p261 = pneg %p62
        %p262 = pneg %p86
        %p263 = pneg %p83
        %p264 = pneg %p107
        %p265 = pneg %p104
        %p266 = pneg %p128
        %p267 = pneg %p125
        %p268 = pneg %p154
        %p269 = pneg %p151
        %s270 = sand.u32 %s141, 1
        %s271 = scalar_lea.sflag [#allocation4], %s270
        %s272 = sand.u32 %s141, 1
        %s273 = smul.addr %s272, 8
        %s274 = scalar_lea.vmem [#allocation8], %s273
        %v275 = vld [vmem:[%s237] sm:$0xff]
        %v276 = vld [vmem:[#allocation5] sm:$0xff]
        %v277 = vld [vmem:[#allocation5 + $0x8] sm:$0xff]
        %v278 = vld [vmem:[#allocation5 + $0x10] sm:$0xff]
        %v279 = vld [vmem:[#allocation5 + $0x18] sm:$0xff]
        %v280 = vld [vmem:[#allocation5 + $0x20] sm:$0xff]
        %v281 = vld [vmem:[#allocation5 + $0x28] sm:$0xff]
        %v282 = vld [vmem:[#allocation5 + $0x30] sm:$0xff]
        %v283 = vld [vmem:[#allocation5 + $0x38] sm:$0xff]
        %v284 = vld [vmem:[#allocation5 + $0x40] sm:$0xff]
        %v285 = vld [vmem:[#allocation5 + $0x48] sm:$0xff]
        %v286 = vld [vmem:[#allocation5 + $0x50] sm:$0xff]
        %v287 = vld [vmem:[#allocation5 + $0x58] sm:$0xff]
        %v288 = vld [vmem:[#allocation5 + $0x60] sm:$0xff]
        %v289 = vld [vmem:[#allocation5 + $0x68] sm:$0xff]
        %v290 = vld [vmem:[#allocation5 + $0x70] sm:$0xff]
        %v291 = vld [vmem:[#allocation5 + $0x78] sm:$0xff]
        %v292 = vld [vmem:[%s2] sm:$0x1]
        %v294 = vperm.slane %v292, 0
        %296 = vmatpush.msra.mxu0 %v291
        %297 = vmatpush.msra.mxu0 %v290
        %298 = vmatpush.msra.mxu0 %v289
        %299 = vmatpush.msra.mxu0 %v288
        %300 = vmatpush.msra.mxu0 %v287
        %301 = vmatpush.msra.mxu0 %v286
        %302 = vmatpush.msra.mxu0 %v285
        %303 = vmatpush.msra.mxu0 %v284
        %304 = vmatpush.msra.mxu0 %v283
        %305 = vmatpush.msra.mxu0 %v282
        %306 = vmatpush.msra.mxu0 %v281
        %307 = vmatpush.msra.mxu0 %v280
        %308 = vmatpush.msra.mxu0 %v279
        %309 = vmatpush.msra.mxu0 %v278
        %310 = vmatpush.msra.mxu0 %v277
        %311 = vmatpush.msra.mxu0 %v276
        %312 = vmatmul.f32.gmra.mxu0 %v275
        %v313 = vpop.f32.mrf.mxu0
        %v314 = vadd.f32 %v294, %v313
        %315 = vdwg.mxu0
        %v316 = vmul.f32 %v314, %v314
        %v317 = vmul.f32 %v316, 0.035677407
        %v318 = vadd.f32 %v317, 0.7978846
        %v319 = vmul.f32 %v314, %v318
        %v320 = vtanh.pop %v319
        %v321 = vmul.f32 %v320, 0.5
        %v322 = vadd.f32 %v321, 0.5
        %v323 = vmul.f32 %v314, %v322
        %v324 = vld [vmem:[#allocation7] sm:$0xff]
        %v325 = vld [vmem:[#allocation7 + $0x8] sm:$0xff]
        %v326 = vld [vmem:[#allocation7 + $0x10] sm:$0xff]
        %v327 = vld [vmem:[#allocation7 + $0x18] sm:$0xff]
        %v328 = vld [vmem:[#allocation7 + $0x20] sm:$0xff]
        %v329 = vld [vmem:[#allocation7 + $0x28] sm:$0xff]
        %v330 = vld [vmem:[#allocation7 + $0x30] sm:$0xff]
        %v331 = vld [vmem:[#allocation7 + $0x38] sm:$0xff]
        %v332 = vld [vmem:[#allocation7 + $0x40] sm:$0xff]
        %v333 = vld [vmem:[#allocation7 + $0x48] sm:$0xff]
        %v334 = vld [vmem:[#allocation7 + $0x50] sm:$0xff]
        %v335 = vld [vmem:[#allocation7 + $0x58] sm:$0xff]
        %v336 = vld [vmem:[#allocation7 + $0x60] sm:$0xff]
        %v337 = vld [vmem:[#allocation7 + $0x68] sm:$0xff]
        %v338 = vld [vmem:[#allocation7 + $0x70] sm:$0xff]
        %v339 = vld [vmem:[#allocation7 + $0x78] sm:$0xff]
        %v340 = vld [vmem:[%s4] sm:$0x1]
        %v342 = vperm.slane %v340, 0
        %344 = vmatpush.msra.mxu0 %v339
        %345 = vmatpush.msra.mxu0 %v338
        %346 = vmatpush.msra.mxu0 %v337
        %347 = vmatpush.msra.mxu0 %v336
        %348 = vmatpush.msra.mxu0 %v335
        %349 = vmatpush.msra.mxu0 %v334
        %350 = vmatpush.msra.mxu0 %v333
        %351 = vmatpush.msra.mxu0 %v332
        %352 = vmatpush.msra.mxu0 %v331
        %353 = vmatpush.msra.mxu0 %v330
        %354 = vmatpush.msra.mxu0 %v329
        %355 = vmatpush.msra.mxu0 %v328
        %356 = vmatpush.msra.mxu0 %v327
        %357 = vmatpush.msra.mxu0 %v326
        %358 = vmatpush.msra.mxu0 %v325
        %359 = vmatpush.msra.mxu0 %v324
        %360 = vmatmul.f32.gmra.mxu0 %v323
        %v361 = vpop.f32.mrf.mxu0
        %v362 = vadd.f32 %v342, %v361
        %363 = vdwg.mxu0
        %364 = vst [vmem:[%s274] sm:$0xff] %v362
        %s365 = sand.u32 %s141, 1
        %s366 = scalar_lea.sflag [#allocation4], %s365
        %s367 = sand.u32 %s141, 1
        %s368 = smul.addr %s367, 8
        %s369 = scalar_lea.vmem [#allocation8], %s368
        // Predicated region
        $region53: #{tpu_custom_call.1} parent=39 // pred_check
          %p370 = pneg %p151
        $region54: #{tpu_custom_call.1} parent=39 // pred_check_branch
          %372 = sbr.rel (%p370) target = $region56
        $region55: #{tpu_custom_call.1} parent=39 // pred_region
          %374 = vsyncadd %s366, 0
          %s375 = smul.addr %s23, 8
          %s376 = scalar_lea.hbm %s5, %s375
          %s378 = sshll.u32 %s369, 4
          %s379 = int_to_ptr.vmem [resolvable:$true] %s378
          %s380 = sshll.u32 %s376, 4
          %s381 = int_to_ptr.hbm [resolvable:$true] %s380
          %383 = dma.vmem_to_hbm [thread:$0]  %s379, 128, %s381, %s366
        $region56: #{tpu_custom_call.1} parent=39 // pred_fallthru
          _
      $region40: #{tpu_custom_call.1} parent=5 // pred_fallthru
        _
      %p384 = scmp.le.s32.totalorder 2, %s18
      // Predicated region
      $region57: #{tpu_custom_call.1} parent=5 // pred_check
        %p385 = pneg %p384
      $region58: #{tpu_custom_call.1} parent=5 // pred_check_branch
        %387 = sbr.rel (%p385) target = $region60
      $region59: #{tpu_custom_call.1} parent=5 // pred_region
        %s388 = ssub.s32 %s18, 2
        // Predicated region
        $region61: #{tpu_custom_call.1} parent=59 // pred_check
          %p389 = pneg %p157
        $region62: #{tpu_custom_call.1} parent=59 // pred_check_branch
          %391 = sbr.rel (%p389) target = $region64
        $region63: #{tpu_custom_call.1} parent=59 // pred_region
          %s392 = sand.u32 %s142, 1
          %s393 = scalar_lea.sflag [#allocation4], %s392
          %s394 = sand.u32 %s142, 1
          %s395 = smul.addr %s394, 8
          %s396 = scalar_lea.vmem [#allocation8], %s395
          %398 = dma.done %s393, 128
        $region64: #{tpu_custom_call.1} parent=59 // pred_fallthru
          _
      $region60: #{tpu_custom_call.1} parent=5 // pred_fallthru
        _
    $region6: #{tpu_custom_call.1} parent=1 // loop_footer
      %s22 = sadd.s32 1, %s18
    $region7: #{tpu_custom_call.1} parent=1 // loop_footer_branch
      %17 = sbr.rel target = $region3
    $region8: #{tpu_custom_call.1} parent=1 // loop_exit
      _
    %399 = vsyncpa [#allocation3], 1
    %s400 = scalar_lea.sflag [#allocation3], 1
    %401 = vsyncpa %s400, 1
    %402 = vsyncpa [#allocation6], 1
    %403 = vsyncpa [#allocation4], 1
    %s404 = scalar_lea.sflag [#allocation4], 1
    %405 = vsyncpa %s404, 1

</llo_original>
